<compile_context>
chip_gen: v7x
topology: tpu7x:2x2x1
jax: 0.10.0
libtpu: 0.0.40
codegen_flags: <defaults>
</compile_context>

<pallas_src>
import jax
import jax.numpy as jnp
from jax.experimental import pallas as pl
from jax.experimental.pallas import tpu as pltpu

_EPS = 1e-5


# --------------------------------------------------------------------------
# Channels-last path: x laid out (..., C), normalize over the last dim.
# --------------------------------------------------------------------------
def _biasfree_ln_rows_kernel(x_ref, w_ref, o_ref):
    # x_ref: (tm, C) tile, w_ref: (1, C)
    x = x_ref[...].astype(jnp.float32)
    inv_c = jnp.float32(1.0 / x.shape[-1])
    # One-pass biased variance: E[x^2] - E[x]^2, f32 accumulation.
    s1 = jnp.sum(x, axis=-1, keepdims=True) * inv_c
    s2 = jnp.sum(x * x, axis=-1, keepdims=True) * inv_c
    var = jnp.maximum(s2 - s1 * s1, 0.0)
    inv = jax.lax.rsqrt(var + _EPS)                      # (tm, 1)
    w = w_ref[...].astype(jnp.float32)                   # (1, C), broadcasts over rows
    o_ref[...] = (x * inv * w).astype(o_ref.dtype)


def biasfree_layernorm(x, weight, *, row_tile=4096):
    """x: (..., C), weight: (C,). Returns same shape/dtype as x."""
    C = x.shape[-1]
    assert weight.shape == (C,)
    orig_shape = x.shape
    x2 = x.reshape(-1, C)                                # (R, C), no data movement
    R = x2.shape[0]

    # Large row tile (~1 MiB of f32 at C=48) so DMA amortizes the ~0.35us/step
    # overhead.  Multiple of 16 so both f32 (8) and bf16 (16) sublane tiling
    # divide it; if R fits in one tile, use the full extent (always legal).
    row_tile = max(16, (row_tile // 16) * 16)
    tm = R if R <= row_tile else row_tile
    grid = pl.cdiv(R, tm)        # partial last block is masked by Pallas: no padding copy

    w2 = weight.reshape(1, C)

    out = pl.pallas_call(
        _biasfree_ln_rows_kernel,
        out_shape=jax.ShapeDtypeStruct((R, C), x.dtype),
        grid_spec=pltpu.PrefetchScalarGridSpec(
            num_scalar_prefetch=0,
            grid=(grid,),
            in_specs=[
                pl.BlockSpec((tm, C), lambda i: (i, 0)),   # x rows tile
                pl.BlockSpec((1, C), lambda i: (0, 0)),    # weight: constant block, no re-DMA
            ],
            out_specs=pl.BlockSpec((tm, C), lambda i: (i, 0)),
        ),
        compiler_params=pltpu.CompilerParams(
            dimension_semantics=("parallel",),             # shards grid across v7x's 2 TCs
        ),
    )(x2, w2)

    return out.reshape(orig_shape)


# --------------------------------------------------------------------------
# Channels-first path (Restormer NCHW source layout): x is (B, C, N) with
# N = H*W on the lane axis; normalize over C (sublane axis).  Lane-dense
# stores; only use when the producer already hands over channels-first data.
# --------------------------------------------------------------------------
def _biasfree_ln_cfirst_kernel(x_ref, w_ref, o_ref):
    # x_ref: (C, tn) tile; reduce over sublane axis 0, lanes stay dense.
    x = x_ref[...].astype(jnp.float32)
    inv_c = jnp.float32(1.0 / x.shape[0])
    s1 = jnp.sum(x, axis=0, keepdims=True) * inv_c
    s2 = jnp.sum(x * x, axis=0, keepdims=True) * inv_c
    var = jnp.maximum(s2 - s1 * s1, 0.0)
    inv = jax.lax.rsqrt(var + _EPS)                      # (1, tn)
    w = w_ref[...].astype(jnp.float32)                   # (C, 1), broadcasts over lanes
    o_ref[...] = (x * inv * w).astype(o_ref.dtype)


def biasfree_layernorm_cfirst(x, weight, *, lane_tile=2048):
    """x: (B, C, N) (e.g. NCHW with H*W flattened), weight: (C,). Normalizes over C."""
    B, C, N = x.shape
    assert weight.shape == (C,)

    lane_tile = max(128, (lane_tile // 128) * 128)
    tn = N if N <= lane_tile else lane_tile
    grid_n = pl.cdiv(N, tn)

    w2 = weight.reshape(C, 1)

    out = pl.pallas_call(
        _biasfree_ln_cfirst_kernel,
        out_shape=jax.ShapeDtypeStruct((B, C, N), x.dtype),
        grid_spec=pltpu.PrefetchScalarGridSpec(
            num_scalar_prefetch=0,
            grid=(B, grid_n),
            in_specs=[
                pl.BlockSpec((None, C, tn), lambda b, j: (b, 0, j)),  # batch dim squeezed
                pl.BlockSpec((C, 1), lambda b, j: (0, 0)),            # weight, constant block
            ],
            out_specs=pl.BlockSpec((None, C, tn), lambda b, j: (b, 0, j)),
        ),
        compiler_params=pltpu.CompilerParams(
            dimension_semantics=("parallel", "parallel"),
        ),
    )(x, w2)
    return out


if __name__ == "__main__":
    key = jax.random.PRNGKey(0)
    B, H, W, C = 2, 16, 16, 48                    # normalized_shape = C = 48
    kx, _ = jax.random.split(key)
    # Channels-last layout, matching how Restormer rearranges NCHW -> (B, H*W, C).
    x = jax.random.normal(kx, (B, H * W, C), dtype=jnp.float32)

    # Deterministic parameter init: weight = ones(normalized_shape), as in __init__.
    weight = jnp.ones((C,), dtype=jnp.float32)

    # Reference in plain JAX (same semantics as the PyTorch forward).
    sigma = jnp.var(x, axis=-1, keepdims=True)    # biased (unbiased=False)
    ref = x / jnp.sqrt(sigma + 1e-5) * weight

    # 1) channels-last kernel
    out = biasfree_layernorm(x, weight)
    out = jax.block_until_ready(out)
    assert out.shape == x.shape
    assert jnp.max(jnp.abs(out - ref)) < 2e-5, "mismatch vs reference (channels-last)"

    # 2) lane-dense channels-first kernel (NCHW source layout); transpose here is
    #    only to build the alternate-layout test input.
    x_cf = jnp.transpose(x, (0, 2, 1))            # (B, C, H*W)
    out_cf = biasfree_layernorm_cfirst(x_cf, weight)
    out_cf = jax.block_until_ready(out_cf)
    ref_cf = jnp.transpose(ref, (0, 2, 1))
    assert out_cf.shape == x_cf.shape
    assert jnp.max(jnp.abs(out_cf - ref_cf)) < 2e-5, "mismatch vs reference (channels-first)"

    print("KERNEL_OK")
</pallas_src>

<mosaic_0001>
module attributes {stable_mosaic.version = 11 : i64} {
  func.func @_biasfree_ln_rows_kernel(%arg0: i32, %arg1: memref<512x48xf32, #tpu.memory_space<vmem>>, %arg2: memref<1x48xf32, #tpu.memory_space<vmem>>, %arg3: memref<512x48xf32, #tpu.memory_space<vmem>>) attributes {dimension_semantics = [#tpu.dimension_semantics<parallel>], iteration_bounds = array<i64: 1>, scalar_prefetch = 0 : i64, scratch_operands = 0 : i64, tpu.core_type = #tpu.core_type<tc>, window_params = [{transform_indices = @transform_0, window_bounds = array<i64: 512, 48>}, {pipeline_mode = #tpu.pipeline_mode<synchronous>, transform_indices = @transform_1, window_bounds = array<i64: 1, 48>}, {transform_indices = @transform_2, window_bounds = array<i64: 512, 48>}]} {
    %c0 = arith.constant 0 : index
    %c0_0 = arith.constant 0 : index
    %0 = vector.load %arg1[%c0, %c0_0] : memref<512x48xf32, #tpu.memory_space<vmem>>, vector<512x48xf32>
    %cst = arith.constant dense<0.000000e+00> : vector<512xf32>
    %1 = vector.multi_reduction <add>, %0, %cst [1] : vector<512x48xf32> to vector<512xf32>
    %2 = vector.shape_cast %1 : vector<512xf32> to vector<512x1xf32>
    %cst_1 = arith.constant 0.020833334 : f32
    %3 = vector.broadcast %cst_1 : f32 to vector<512x1xf32>
    %4 = arith.mulf %2, %3 : vector<512x1xf32>
    %5 = arith.mulf %0, %0 : vector<512x48xf32>
    %cst_2 = arith.constant dense<0.000000e+00> : vector<512xf32>
    %6 = vector.multi_reduction <add>, %5, %cst_2 [1] : vector<512x48xf32> to vector<512xf32>
    %7 = vector.shape_cast %6 : vector<512xf32> to vector<512x1xf32>
    %cst_3 = arith.constant 0.020833334 : f32
    %8 = vector.broadcast %cst_3 : f32 to vector<512x1xf32>
    %9 = arith.mulf %7, %8 : vector<512x1xf32>
    %10 = arith.mulf %4, %4 : vector<512x1xf32>
    %11 = arith.subf %9, %10 : vector<512x1xf32>
    %cst_4 = arith.constant 0.000000e+00 : f32
    %12 = vector.broadcast %cst_4 : f32 to vector<512x1xf32>
    %13 = arith.maximumf %11, %12 : vector<512x1xf32>
    %cst_5 = arith.constant 9.99999974E-6 : f32
    %14 = vector.broadcast %cst_5 : f32 to vector<512x1xf32>
    %15 = arith.addf %13, %14 : vector<512x1xf32>
    %16 = math.rsqrt %15 : vector<512x1xf32>
    %c0_6 = arith.constant 0 : index
    %c0_7 = arith.constant 0 : index
    %17 = vector.load %arg2[%c0_6, %c0_7] : memref<1x48xf32, #tpu.memory_space<vmem>>, vector<1x48xf32>
    %18 = vector.broadcast %16 : vector<512x1xf32> to vector<512x48xf32>
    %19 = arith.mulf %0, %18 : vector<512x48xf32>
    %20 = vector.broadcast %17 : vector<1x48xf32> to vector<512x48xf32>
    %21 = arith.mulf %19, %20 : vector<512x48xf32>
    %c0_8 = arith.constant 0 : index
    %c0_9 = arith.constant 0 : index
    %22 = vector.load %arg3[%c0_8, %c0_9] : memref<512x48xf32, #tpu.memory_space<vmem>>, vector<512x48xf32>
    tpu.vector_store %arg3[%c0_8, %c0_9], %21 {strides = array<i32>} : memref<512x48xf32, #tpu.memory_space<vmem>>, vector<512x48xf32>,
    return
  }
  func.func @transform_0(%arg0: i32) -> (i32, i32) {
    %c0_i32 = arith.constant 0 : i32
    %c0_i32_0 = arith.constant 0 : i32
    return %arg0, %c0_i32 : i32, i32
  }
  func.func @transform_1(%arg0: i32) -> (i32, i32) {
    %c0_i32 = arith.constant 0 : i32
    %c0_i32_0 = arith.constant 0 : i32
    %c0_i32_1 = arith.constant 0 : i32
    return %c0_i32, %c0_i32_0 : i32, i32
  }
  func.func @transform_2(%arg0: i32) -> (i32, i32) {
    %c0_i32 = arith.constant 0 : i32
    %c0_i32_0 = arith.constant 0 : i32
    return %arg0, %c0_i32 : i32, i32
  }
}

</mosaic_0001>

<llo_original>
// kernel: tpu_custom_call.1
$region0: #{tpu_custom_call.1}
  #allocation0 [shape = 'u32[]', space=smem, size = 0x4, offset = 0x4, fixed_abs, tag = 'smem constant byte address 0x4 - core index']
  #allocation1 [shape = 'u32[144,128]{1,0:T(1,128)}', space=vmem, size = 0x12000, scoped, tag = 'internal scratch']
  %s0 = inlined_call_operand.vmem [shape: f32[512,48], index: 0, kind: input, shape index: {}]
  %s1 = inlined_call_operand.vmem [shape: f32[1,48], index: 1, kind: input, shape index: {}]
  %s2 = inlined_call_operand.vmem [shape: f32[512,48], index: 2, kind: output, shape index: {}]
  %s3 = sld [smem:[#allocation0]]
  $region18: #{tpu_custom_call.1} parent=0
    _
  %s5 = ssub.s32 1, %s3
  %s6 = scalar_select 0, %s5, %s3
  // Predicated region
  $region2: #{tpu_custom_call.1} parent=0 // pred_check
    _
  $region3: #{tpu_custom_call.1} parent=0 // pred_check_branch
    %8 = sbr.rel (0) target = $region5
  $region4: #{tpu_custom_call.1} parent=0 // pred_region
    _
  $region5: #{tpu_custom_call.1} parent=0 // pred_fallthru
    _
  // Predicated region
  $region6: #{tpu_custom_call.1} parent=0 // pred_check
    _
  $region7: #{tpu_custom_call.1} parent=0 // pred_check_branch
    %10 = sbr.rel (0) target = $region9
  $region8: #{tpu_custom_call.1} parent=0 // pred_region
    _
  $region9: #{tpu_custom_call.1} parent=0 // pred_fallthru
    _
  %v11 = vld [vmem:[%s0] sm:$0xff]
  %v12 = vld [vmem:[%s0 + $0x8] sm:$0xff]
  %v13 = vld [vmem:[%s0 + $0x10] sm:$0xff]
  %v14 = vld [vmem:[%s0 + $0x18] sm:$0xff]
  %v15 = vld [vmem:[%s0 + $0x20] sm:$0xff]
  %v16 = vld [vmem:[%s0 + $0x28] sm:$0xff]
  %v17 = vld [vmem:[%s0 + $0x30] sm:$0xff]
  %v18 = vld [vmem:[%s0 + $0x38] sm:$0xff]
  %v19 = vld [vmem:[%s0 + $0x40] sm:$0xff]
  %v20 = vld [vmem:[%s0 + $0x48] sm:$0xff]
  %v21 = vld [vmem:[%s0 + $0x50] sm:$0xff]
  %v22 = vld [vmem:[%s0 + $0x58] sm:$0xff]
  %v23 = vld [vmem:[%s0 + $0x60] sm:$0xff]
  %v24 = vld [vmem:[%s0 + $0x68] sm:$0xff]
  %v25 = vld [vmem:[%s0 + $0x70] sm:$0xff]
  %v26 = vld [vmem:[%s0 + $0x78] sm:$0xff]
  %v27 = vld [vmem:[%s0 + $0x80] sm:$0xff]
  %v28 = vld [vmem:[%s0 + $0x88] sm:$0xff]
  %v29 = vld [vmem:[%s0 + $0x90] sm:$0xff]
  %v30 = vld [vmem:[%s0 + $0x98] sm:$0xff]
  %v31 = vld [vmem:[%s0 + $0xa0] sm:$0xff]
  %v32 = vld [vmem:[%s0 + $0xa8] sm:$0xff]
  %v33 = vld [vmem:[%s0 + $0xb0] sm:$0xff]
  %v34 = vld [vmem:[%s0 + $0xb8] sm:$0xff]
  %v35 = vld [vmem:[%s0 + $0xc0] sm:$0xff]
  %v36 = vld [vmem:[%s0 + $0xc8] sm:$0xff]
  %v37 = vld [vmem:[%s0 + $0xd0] sm:$0xff]
  %v38 = vld [vmem:[%s0 + $0xd8] sm:$0xff]
  %v39 = vld [vmem:[%s0 + $0xe0] sm:$0xff]
  %v40 = vld [vmem:[%s0 + $0xe8] sm:$0xff]
  %v41 = vld [vmem:[%s0 + $0xf0] sm:$0xff]
  %v42 = vld [vmem:[%s0 + $0xf8] sm:$0xff]
  %v43 = vld [vmem:[%s0 + $0x100] sm:$0xff]
  %v44 = vld [vmem:[%s0 + $0x108] sm:$0xff]
  %v45 = vld [vmem:[%s0 + $0x110] sm:$0xff]
  %v46 = vld [vmem:[%s0 + $0x118] sm:$0xff]
  %v47 = vld [vmem:[%s0 + $0x120] sm:$0xff]
  %v48 = vld [vmem:[%s0 + $0x128] sm:$0xff]
  %v49 = vld [vmem:[%s0 + $0x130] sm:$0xff]
  %v50 = vld [vmem:[%s0 + $0x138] sm:$0xff]
  %v51 = vld [vmem:[%s0 + $0x140] sm:$0xff]
  %v52 = vld [vmem:[%s0 + $0x148] sm:$0xff]
  %v53 = vld [vmem:[%s0 + $0x150] sm:$0xff]
  %v54 = vld [vmem:[%s0 + $0x158] sm:$0xff]
  %v55 = vld [vmem:[%s0 + $0x160] sm:$0xff]
  %v56 = vld [vmem:[%s0 + $0x168] sm:$0xff]
  %v57 = vld [vmem:[%s0 + $0x170] sm:$0xff]
  %v58 = vld [vmem:[%s0 + $0x178] sm:$0xff]
  %v59 = vld [vmem:[%s0 + $0x180] sm:$0xff]
  %v60 = vld [vmem:[%s0 + $0x188] sm:$0xff]
  %v61 = vld [vmem:[%s0 + $0x190] sm:$0xff]
  %v62 = vld [vmem:[%s0 + $0x198] sm:$0xff]
  %v63 = vld [vmem:[%s0 + $0x1a0] sm:$0xff]
  %v64 = vld [vmem:[%s0 + $0x1a8] sm:$0xff]
  %v65 = vld [vmem:[%s0 + $0x1b0] sm:$0xff]
  %v66 = vld [vmem:[%s0 + $0x1b8] sm:$0xff]
  %v67 = vld [vmem:[%s0 + $0x1c0] sm:$0xff]
  %v68 = vld [vmem:[%s0 + $0x1c8] sm:$0xff]
  %v69 = vld [vmem:[%s0 + $0x1d0] sm:$0xff]
  %v70 = vld [vmem:[%s0 + $0x1d8] sm:$0xff]
  %v71 = vld [vmem:[%s0 + $0x1e0] sm:$0xff]
  %v72 = vld [vmem:[%s0 + $0x1e8] sm:$0xff]
  %v73 = vld [vmem:[%s0 + $0x1f0] sm:$0xff]
  %v74 = vld [vmem:[%s0 + $0x1f8] sm:$0xff]
  %vm75 = vcmask 392192
  %v76 = vsel %vm75, %v11, 0.0
  %77 = vadd.xlane.f32.xlu0 %v76
  %v78 = vpop.xlane.xlu0 %77
  %v79 = vsel %vm75, %v12, 0.0
  %80 = vadd.xlane.f32.xlu0 %v79
  %v81 = vpop.xlane.xlu0 %80
  %v82 = vsel %vm75, %v13, 0.0
  %83 = vadd.xlane.f32.xlu0 %v82
  %v84 = vpop.xlane.xlu0 %83
  %v85 = vsel %vm75, %v14, 0.0
  %86 = vadd.xlane.f32.xlu0 %v85
  %v87 = vpop.xlane.xlu0 %86
  %v88 = vsel %vm75, %v15, 0.0
  %89 = vadd.xlane.f32.xlu0 %v88
  %v90 = vpop.xlane.xlu0 %89
  %v91 = vsel %vm75, %v16, 0.0
  %92 = vadd.xlane.f32.xlu0 %v91
  %v93 = vpop.xlane.xlu0 %92
  %v94 = vsel %vm75, %v17, 0.0
  %95 = vadd.xlane.f32.xlu0 %v94
  %v96 = vpop.xlane.xlu0 %95
  %v97 = vsel %vm75, %v18, 0.0
  %98 = vadd.xlane.f32.xlu0 %v97
  %v99 = vpop.xlane.xlu0 %98
  %v100 = vsel %vm75, %v19, 0.0
  %101 = vadd.xlane.f32.xlu0 %v100
  %v102 = vpop.xlane.xlu0 %101
  %v103 = vsel %vm75, %v20, 0.0
  %104 = vadd.xlane.f32.xlu0 %v103
  %v105 = vpop.xlane.xlu0 %104
  %v106 = vsel %vm75, %v21, 0.0
  %107 = vadd.xlane.f32.xlu0 %v106
  %v108 = vpop.xlane.xlu0 %107
  %v109 = vsel %vm75, %v22, 0.0
  %110 = vadd.xlane.f32.xlu0 %v109
  %v111 = vpop.xlane.xlu0 %110
  %v112 = vsel %vm75, %v23, 0.0
  %113 = vadd.xlane.f32.xlu0 %v112
  %v114 = vpop.xlane.xlu0 %113
  %v115 = vsel %vm75, %v24, 0.0
  %116 = vadd.xlane.f32.xlu0 %v115
  %v117 = vpop.xlane.xlu0 %116
  %v118 = vsel %vm75, %v25, 0.0
  %119 = vadd.xlane.f32.xlu0 %v118
  %v120 = vpop.xlane.xlu0 %119
  %v121 = vsel %vm75, %v26, 0.0
  %122 = vadd.xlane.f32.xlu0 %v121
  %v123 = vpop.xlane.xlu0 %122
  %v124 = vsel %vm75, %v27, 0.0
  %125 = vadd.xlane.f32.xlu0 %v124
  %v126 = vpop.xlane.xlu0 %125
  %v127 = vsel %vm75, %v28, 0.0
  %128 = vadd.xlane.f32.xlu0 %v127
  %v129 = vpop.xlane.xlu0 %128
  %v130 = vsel %vm75, %v29, 0.0
  %131 = vadd.xlane.f32.xlu0 %v130
  %v132 = vpop.xlane.xlu0 %131
  %v133 = vsel %vm75, %v30, 0.0
  %134 = vadd.xlane.f32.xlu0 %v133
  %v135 = vpop.xlane.xlu0 %134
  %v136 = vsel %vm75, %v31, 0.0
  %137 = vadd.xlane.f32.xlu0 %v136
  %v138 = vpop.xlane.xlu0 %137
  %v139 = vsel %vm75, %v32, 0.0
  %140 = vadd.xlane.f32.xlu0 %v139
  %v141 = vpop.xlane.xlu0 %140
  %v142 = vsel %vm75, %v33, 0.0
  %143 = vadd.xlane.f32.xlu0 %v142
  %v144 = vpop.xlane.xlu0 %143
  %v145 = vsel %vm75, %v34, 0.0
  %146 = vadd.xlane.f32.xlu0 %v145
  %v147 = vpop.xlane.xlu0 %146
  %v148 = vsel %vm75, %v35, 0.0
  %149 = vadd.xlane.f32.xlu0 %v148
  %v150 = vpop.xlane.xlu0 %149
  %v151 = vsel %vm75, %v36, 0.0
  %152 = vadd.xlane.f32.xlu0 %v151
  %v153 = vpop.xlane.xlu0 %152
  %v154 = vsel %vm75, %v37, 0.0
  %155 = vadd.xlane.f32.xlu0 %v154
  %v156 = vpop.xlane.xlu0 %155
  %v157 = vsel %vm75, %v38, 0.0
  %158 = vadd.xlane.f32.xlu0 %v157
  %v159 = vpop.xlane.xlu0 %158
  %v160 = vsel %vm75, %v39, 0.0
  %161 = vadd.xlane.f32.xlu0 %v160
  %v162 = vpop.xlane.xlu0 %161
  %v163 = vsel %vm75, %v40, 0.0
  %164 = vadd.xlane.f32.xlu0 %v163
  %v165 = vpop.xlane.xlu0 %164
  %v166 = vsel %vm75, %v41, 0.0
  %167 = vadd.xlane.f32.xlu0 %v166
  %v168 = vpop.xlane.xlu0 %167
  %v169 = vsel %vm75, %v42, 0.0
  %170 = vadd.xlane.f32.xlu0 %v169
  %v171 = vpop.xlane.xlu0 %170
  %v172 = vsel %vm75, %v43, 0.0
  %173 = vadd.xlane.f32.xlu0 %v172
  %v174 = vpop.xlane.xlu0 %173
  %v175 = vsel %vm75, %v44, 0.0
  %176 = vadd.xlane.f32.xlu0 %v175
  %v177 = vpop.xlane.xlu0 %176
  %v178 = vsel %vm75, %v45, 0.0
  %179 = vadd.xlane.f32.xlu0 %v178
  %v180 = vpop.xlane.xlu0 %179
  %v181 = vsel %vm75, %v46, 0.0
  %182 = vadd.xlane.f32.xlu0 %v181
  %v183 = vpop.xlane.xlu0 %182
  %v184 = vsel %vm75, %v47, 0.0
  %185 = vadd.xlane.f32.xlu0 %v184
  %v186 = vpop.xlane.xlu0 %185
  %v187 = vsel %vm75, %v48, 0.0
  %188 = vadd.xlane.f32.xlu0 %v187
  %v189 = vpop.xlane.xlu0 %188
  %v190 = vsel %vm75, %v49, 0.0
  %191 = vadd.xlane.f32.xlu0 %v190
  %v192 = vpop.xlane.xlu0 %191
  %v193 = vsel %vm75, %v50, 0.0
  %194 = vadd.xlane.f32.xlu0 %v193
  %v195 = vpop.xlane.xlu0 %194
  %v196 = vsel %vm75, %v51, 0.0
  %197 = vadd.xlane.f32.xlu0 %v196
  %v198 = vpop.xlane.xlu0 %197
  %v199 = vsel %vm75, %v52, 0.0
  %200 = vadd.xlane.f32.xlu0 %v199
  %v201 = vpop.xlane.xlu0 %200
  %v202 = vsel %vm75, %v53, 0.0
  %203 = vadd.xlane.f32.xlu0 %v202
  %v204 = vpop.xlane.xlu0 %203
  %v205 = vsel %vm75, %v54, 0.0
  %206 = vadd.xlane.f32.xlu0 %v205
  %v207 = vpop.xlane.xlu0 %206
  %v208 = vsel %vm75, %v55, 0.0
  %209 = vadd.xlane.f32.xlu0 %v208
  %v210 = vpop.xlane.xlu0 %209
  %v211 = vsel %vm75, %v56, 0.0
  %212 = vadd.xlane.f32.xlu0 %v211
  %v213 = vpop.xlane.xlu0 %212
  %v214 = vsel %vm75, %v57, 0.0
  %215 = vadd.xlane.f32.xlu0 %v214
  %v216 = vpop.xlane.xlu0 %215
  %v217 = vsel %vm75, %v58, 0.0
  %218 = vadd.xlane.f32.xlu0 %v217
  %v219 = vpop.xlane.xlu0 %218
  %v220 = vsel %vm75, %v59, 0.0
  %221 = vadd.xlane.f32.xlu0 %v220
  %v222 = vpop.xlane.xlu0 %221
  %v223 = vsel %vm75, %v60, 0.0
  %224 = vadd.xlane.f32.xlu0 %v223
  %v225 = vpop.xlane.xlu0 %224
  %v226 = vsel %vm75, %v61, 0.0
  %227 = vadd.xlane.f32.xlu0 %v226
  %v228 = vpop.xlane.xlu0 %227
  %v229 = vsel %vm75, %v62, 0.0
  %230 = vadd.xlane.f32.xlu0 %v229
  %v231 = vpop.xlane.xlu0 %230
  %v232 = vsel %vm75, %v63, 0.0
  %233 = vadd.xlane.f32.xlu0 %v232
  %v234 = vpop.xlane.xlu0 %233
  %v235 = vsel %vm75, %v64, 0.0
  %236 = vadd.xlane.f32.xlu0 %v235
  %v237 = vpop.xlane.xlu0 %236
  %v238 = vsel %vm75, %v65, 0.0
  %239 = vadd.xlane.f32.xlu0 %v238
  %v240 = vpop.xlane.xlu0 %239
  %v241 = vsel %vm75, %v66, 0.0
  %242 = vadd.xlane.f32.xlu0 %v241
  %v243 = vpop.xlane.xlu0 %242
  %v244 = vsel %vm75, %v67, 0.0
  %245 = vadd.xlane.f32.xlu0 %v244
  %v246 = vpop.xlane.xlu0 %245
  %v247 = vsel %vm75, %v68, 0.0
  %248 = vadd.xlane.f32.xlu0 %v247
  %v249 = vpop.xlane.xlu0 %248
  %v250 = vsel %vm75, %v69, 0.0
  %251 = vadd.xlane.f32.xlu0 %v250
  %v252 = vpop.xlane.xlu0 %251
  %v253 = vsel %vm75, %v70, 0.0
  %254 = vadd.xlane.f32.xlu0 %v253
  %v255 = vpop.xlane.xlu0 %254
  %v256 = vsel %vm75, %v71, 0.0
  %257 = vadd.xlane.f32.xlu0 %v256
  %v258 = vpop.xlane.xlu0 %257
  %v259 = vsel %vm75, %v72, 0.0
  %260 = vadd.xlane.f32.xlu0 %v259
  %v261 = vpop.xlane.xlu0 %260
  %v262 = vsel %vm75, %v73, 0.0
  %263 = vadd.xlane.f32.xlu0 %v262
  %v264 = vpop.xlane.xlu0 %263
  %v265 = vsel %vm75, %v74, 0.0
  %266 = vadd.xlane.f32.xlu0 %v265
  %v267 = vpop.xlane.xlu0 %266
  %v268 = vmul.f32 %v78, 0.020833334
  %v269 = vmul.f32 %v81, 0.020833334
  %v270 = vmul.f32 %v84, 0.020833334
  %v271 = vmul.f32 %v87, 0.020833334
  %v272 = vmul.f32 %v90, 0.020833334
  %v273 = vmul.f32 %v93, 0.020833334
  %v274 = vmul.f32 %v96, 0.020833334
  %v275 = vmul.f32 %v99, 0.020833334
  %v276 = vmul.f32 %v102, 0.020833334
  %v277 = vmul.f32 %v105, 0.020833334
  %v278 = vmul.f32 %v108, 0.020833334
  %v279 = vmul.f32 %v111, 0.020833334
  %v280 = vmul.f32 %v114, 0.020833334
  %v281 = vmul.f32 %v117, 0.020833334
  %v282 = vmul.f32 %v120, 0.020833334
  %v283 = vmul.f32 %v123, 0.020833334
  %v284 = vmul.f32 %v126, 0.020833334
  %v285 = vmul.f32 %v129, 0.020833334
  %v286 = vmul.f32 %v132, 0.020833334
  %v287 = vmul.f32 %v135, 0.020833334
  %v288 = vmul.f32 %v138, 0.020833334
  %v289 = vmul.f32 %v141, 0.020833334
  %v290 = vmul.f32 %v144, 0.020833334
  %v291 = vmul.f32 %v147, 0.020833334
  %v292 = vmul.f32 %v150, 0.020833334
  %v293 = vmul.f32 %v153, 0.020833334
  %v294 = vmul.f32 %v156, 0.020833334
  %v295 = vmul.f32 %v159, 0.020833334
  %v296 = vmul.f32 %v162, 0.020833334
  %v297 = vmul.f32 %v165, 0.020833334
  %v298 = vmul.f32 %v168, 0.020833334
  %v299 = vmul.f32 %v171, 0.020833334
  %v300 = vmul.f32 %v174, 0.020833334
  %v301 = vmul.f32 %v177, 0.020833334
  %v302 = vmul.f32 %v180, 0.020833334
  %v303 = vmul.f32 %v183, 0.020833334
  %v304 = vmul.f32 %v186, 0.020833334
  %v305 = vmul.f32 %v189, 0.020833334
  %v306 = vmul.f32 %v192, 0.020833334
  %v307 = vmul.f32 %v195, 0.020833334
  %v308 = vmul.f32 %v198, 0.020833334
  %v309 = vmul.f32 %v201, 0.020833334
  %v310 = vmul.f32 %v204, 0.020833334
  %v311 = vmul.f32 %v207, 0.020833334
  %v312 = vmul.f32 %v210, 0.020833334
  %v313 = vmul.f32 %v213, 0.020833334
  %v314 = vmul.f32 %v216, 0.020833334
  %v315 = vmul.f32 %v219, 0.020833334
  %v316 = vmul.f32 %v222, 0.020833334
  %v317 = vmul.f32 %v225, 0.020833334
  %v318 = vmul.f32 %v228, 0.020833334
  %v319 = vmul.f32 %v231, 0.020833334
  %v320 = vmul.f32 %v234, 0.020833334
  %v321 = vmul.f32 %v237, 0.020833334
  %v322 = vmul.f32 %v240, 0.020833334
  %v323 = vmul.f32 %v243, 0.020833334
  %v324 = vmul.f32 %v246, 0.020833334
  %v325 = vmul.f32 %v249, 0.020833334
  %v326 = vmul.f32 %v252, 0.020833334
  %v327 = vmul.f32 %v255, 0.020833334
  %v328 = vmul.f32 %v258, 0.020833334
  %v329 = vmul.f32 %v261, 0.020833334
  %v330 = vmul.f32 %v264, 0.020833334
  %v331 = vmul.f32 %v267, 0.020833334
  %v332 = vmul.f32 %v11, %v11
  %v333 = vmul.f32 %v12, %v12
  %v334 = vmul.f32 %v13, %v13
  %v335 = vmul.f32 %v14, %v14
  %v336 = vmul.f32 %v15, %v15
  %v337 = vmul.f32 %v16, %v16
  %v338 = vmul.f32 %v17, %v17
  %v339 = vmul.f32 %v18, %v18
  %v340 = vmul.f32 %v19, %v19
  %v341 = vmul.f32 %v20, %v20
  %v342 = vmul.f32 %v21, %v21
  %v343 = vmul.f32 %v22, %v22
  %v344 = vmul.f32 %v23, %v23
  %v345 = vmul.f32 %v24, %v24
  %v346 = vmul.f32 %v25, %v25
  %v347 = vmul.f32 %v26, %v26
  %v348 = vmul.f32 %v27, %v27
  %v349 = vmul.f32 %v28, %v28
  %v350 = vmul.f32 %v29, %v29
  %v351 = vmul.f32 %v30, %v30
  %v352 = vmul.f32 %v31, %v31
  %v353 = vmul.f32 %v32, %v32
  %v354 = vmul.f32 %v33, %v33
  %v355 = vmul.f32 %v34, %v34
  %v356 = vmul.f32 %v35, %v35
  %v357 = vmul.f32 %v36, %v36
  %v358 = vmul.f32 %v37, %v37
  %v359 = vmul.f32 %v38, %v38
  %v360 = vmul.f32 %v39, %v39
  %v361 = vmul.f32 %v40, %v40
  %v362 = vmul.f32 %v41, %v41
  %v363 = vmul.f32 %v42, %v42
  %v364 = vmul.f32 %v43, %v43
  %v365 = vmul.f32 %v44, %v44
  %v366 = vmul.f32 %v45, %v45
  %v367 = vmul.f32 %v46, %v46
  %v368 = vmul.f32 %v47, %v47
  %v369 = vmul.f32 %v48, %v48
  %v370 = vmul.f32 %v49, %v49
  %v371 = vmul.f32 %v50, %v50
  %v372 = vmul.f32 %v51, %v51
  %v373 = vmul.f32 %v52, %v52
  %v374 = vmul.f32 %v53, %v53
  %v375 = vmul.f32 %v54, %v54
  %v376 = vmul.f32 %v55, %v55
  %v377 = vmul.f32 %v56, %v56
  %v378 = vmul.f32 %v57, %v57
  %v379 = vmul.f32 %v58, %v58
  %v380 = vmul.f32 %v59, %v59
  %v381 = vmul.f32 %v60, %v60
  %v382 = vmul.f32 %v61, %v61
  %v383 = vmul.f32 %v62, %v62
  %v384 = vmul.f32 %v63, %v63
  %v385 = vmul.f32 %v64, %v64
  %v386 = vmul.f32 %v65, %v65
  %v387 = vmul.f32 %v66, %v66
  %v388 = vmul.f32 %v67, %v67
  %v389 = vmul.f32 %v68, %v68
  %v390 = vmul.f32 %v69, %v69
  %v391 = vmul.f32 %v70, %v70
  %v392 = vmul.f32 %v71, %v71
  %v393 = vmul.f32 %v72, %v72
  %v394 = vmul.f32 %v73, %v73
  %v395 = vmul.f32 %v74, %v74
  %v396 = vsel %vm75, %v332, 0.0
  %397 = vadd.xlane.f32.xlu0 %v396
  %v398 = vpop.xlane.xlu0 %397
  %v399 = vsel %vm75, %v333, 0.0
  %400 = vadd.xlane.f32.xlu0 %v399
  %v401 = vpop.xlane.xlu0 %400
  %v402 = vsel %vm75, %v334, 0.0
  %403 = vadd.xlane.f32.xlu0 %v402
  %v404 = vpop.xlane.xlu0 %403
  %v405 = vsel %vm75, %v335, 0.0
  %406 = vadd.xlane.f32.xlu0 %v405
  %v407 = vpop.xlane.xlu0 %406
  %v408 = vsel %vm75, %v336, 0.0
  %409 = vadd.xlane.f32.xlu0 %v408
  %v410 = vpop.xlane.xlu0 %409
  %v411 = vsel %vm75, %v337, 0.0
  %412 = vadd.xlane.f32.xlu0 %v411
  %v413 = vpop.xlane.xlu0 %412
  %v414 = vsel %vm75, %v338, 0.0
  %415 = vadd.xlane.f32.xlu0 %v414
  %v416 = vpop.xlane.xlu0 %415
  %v417 = vsel %vm75, %v339, 0.0
  %418 = vadd.xlane.f32.xlu0 %v417
  %v419 = vpop.xlane.xlu0 %418
  %v420 = vsel %vm75, %v340, 0.0
  %421 = vadd.xlane.f32.xlu0 %v420
  %v422 = vpop.xlane.xlu0 %421
  %v423 = vsel %vm75, %v341, 0.0
  %424 = vadd.xlane.f32.xlu0 %v423
  %v425 = vpop.xlane.xlu0 %424
  %v426 = vsel %vm75, %v342, 0.0
  %427 = vadd.xlane.f32.xlu0 %v426
  %v428 = vpop.xlane.xlu0 %427
  %v429 = vsel %vm75, %v343, 0.0
  %430 = vadd.xlane.f32.xlu0 %v429
  %v431 = vpop.xlane.xlu0 %430
  %v432 = vsel %vm75, %v344, 0.0
  %433 = vadd.xlane.f32.xlu0 %v432
  %v434 = vpop.xlane.xlu0 %433
  %v435 = vsel %vm75, %v345, 0.0
  %436 = vadd.xlane.f32.xlu0 %v435
  %v437 = vpop.xlane.xlu0 %436
  %v438 = vsel %vm75, %v346, 0.0
  %439 = vadd.xlane.f32.xlu0 %v438
  %v440 = vpop.xlane.xlu0 %439
  %v441 = vsel %vm75, %v347, 0.0
  %442 = vadd.xlane.f32.xlu0 %v441
  %v443 = vpop.xlane.xlu0 %442
  %v444 = vsel %vm75, %v348, 0.0
  %445 = vadd.xlane.f32.xlu0 %v444
  %v446 = vpop.xlane.xlu0 %445
  %v447 = vsel %vm75, %v349, 0.0
  %448 = vadd.xlane.f32.xlu0 %v447
  %v449 = vpop.xlane.xlu0 %448
  %v450 = vsel %vm75, %v350, 0.0
  %451 = vadd.xlane.f32.xlu0 %v450
  %v452 = vpop.xlane.xlu0 %451
  %v453 = vsel %vm75, %v351, 0.0
  %454 = vadd.xlane.f32.xlu0 %v453
  %v455 = vpop.xlane.xlu0 %454
  %v456 = vsel %vm75, %v352, 0.0
  %457 = vadd.xlane.f32.xlu0 %v456
  %v458 = vpop.xlane.xlu0 %457
  %v459 = vsel %vm75, %v353, 0.0
  %460 = vadd.xlane.f32.xlu0 %v459
  %v461 = vpop.xlane.xlu0 %460
  %v462 = vsel %vm75, %v354, 0.0
  %463 = vadd.xlane.f32.xlu0 %v462
  %v464 = vpop.xlane.xlu0 %463
  %v465 = vsel %vm75, %v355, 0.0
  %466 = vadd.xlane.f32.xlu0 %v465
  %v467 = vpop.xlane.xlu0 %466
  %v468 = vsel %vm75, %v356, 0.0
  %469 = vadd.xlane.f32.xlu0 %v468
  %v470 = vpop.xlane.xlu0 %469
  %v471 = vsel %vm75, %v357, 0.0
  %472 = vadd.xlane.f32.xlu0 %v471
  %v473 = vpop.xlane.xlu0 %472
  %v474 = vsel %vm75, %v358, 0.0
  %475 = vadd.xlane.f32.xlu0 %v474
  %v476 = vpop.xlane.xlu0 %475
  %v477 = vsel %vm75, %v359, 0.0
  %478 = vadd.xlane.f32.xlu0 %v477
  %v479 = vpop.xlane.xlu0 %478
  %v480 = vsel %vm75, %v360, 0.0
  %481 = vadd.xlane.f32.xlu0 %v480
  %v482 = vpop.xlane.xlu0 %481
  %v483 = vsel %vm75, %v361, 0.0
  %484 = vadd.xlane.f32.xlu0 %v483
  %v485 = vpop.xlane.xlu0 %484
  %v486 = vsel %vm75, %v362, 0.0
  %487 = vadd.xlane.f32.xlu0 %v486
  %v488 = vpop.xlane.xlu0 %487
  %v489 = vsel %vm75, %v363, 0.0
  %490 = vadd.xlane.f32.xlu0 %v489
  %v491 = vpop.xlane.xlu0 %490
  %v492 = vsel %vm75, %v364, 0.0
  %493 = vadd.xlane.f32.xlu0 %v492
  %v494 = vpop.xlane.xlu0 %493
  %v495 = vsel %vm75, %v365, 0.0
  %496 = vadd.xlane.f32.xlu0 %v495
  %v497 = vpop.xlane.xlu0 %496
  %v498 = vsel %vm75, %v366, 0.0
  %499 = vadd.xlane.f32.xlu0 %v498
  %v500 = vpop.xlane.xlu0 %499
  %v501 = vsel %vm75, %v367, 0.0
  %502 = vadd.xlane.f32.xlu0 %v501
  %v503 = vpop.xlane.xlu0 %502
  %v504 = vsel %vm75, %v368, 0.0
  %505 = vadd.xlane.f32.xlu0 %v504
  %v506 = vpop.xlane.xlu0 %505
  %v507 = vsel %vm75, %v369, 0.0
  %508 = vadd.xlane.f32.xlu0 %v507
  %v509 = vpop.xlane.xlu0 %508
  %v510 = vsel %vm75, %v370, 0.0
  %511 = vadd.xlane.f32.xlu0 %v510
  %v512 = vpop.xlane.xlu0 %511
  %v513 = vsel %vm75, %v371, 0.0
  %514 = vadd.xlane.f32.xlu0 %v513
  %v515 = vpop.xlane.xlu0 %514
  %v516 = vsel %vm75, %v372, 0.0
  %517 = vadd.xlane.f32.xlu0 %v516
  %v518 = vpop.xlane.xlu0 %517
  %v519 = vsel %vm75, %v373, 0.0
  %520 = vadd.xlane.f32.xlu0 %v519
  %v521 = vpop.xlane.xlu0 %520
  %v522 = vsel %vm75, %v374, 0.0
  %523 = vadd.xlane.f32.xlu0 %v522
  %v524 = vpop.xlane.xlu0 %523
  %v525 = vsel %vm75, %v375, 0.0
  %526 = vadd.xlane.f32.xlu0 %v525
  %v527 = vpop.xlane.xlu0 %526
  %v528 = vsel %vm75, %v376, 0.0
  %529 = vadd.xlane.f32.xlu0 %v528
  %v530 = vpop.xlane.xlu0 %529
  %v531 = vsel %vm75, %v377, 0.0
  %532 = vadd.xlane.f32.xlu0 %v531
  %v533 = vpop.xlane.xlu0 %532
  %v534 = vsel %vm75, %v378, 0.0
  %535 = vadd.xlane.f32.xlu0 %v534
  %v536 = vpop.xlane.xlu0 %535
  %v537 = vsel %vm75, %v379, 0.0
  %538 = vadd.xlane.f32.xlu0 %v537
  %v539 = vpop.xlane.xlu0 %538
  %v540 = vsel %vm75, %v380, 0.0
  %541 = vadd.xlane.f32.xlu0 %v540
  %v542 = vpop.xlane.xlu0 %541
  %v543 = vsel %vm75, %v381, 0.0
  %544 = vadd.xlane.f32.xlu0 %v543
  %v545 = vpop.xlane.xlu0 %544
  %v546 = vsel %vm75, %v382, 0.0
  %547 = vadd.xlane.f32.xlu0 %v546
  %v548 = vpop.xlane.xlu0 %547
  %v549 = vsel %vm75, %v383, 0.0
  %550 = vadd.xlane.f32.xlu0 %v549
  %v551 = vpop.xlane.xlu0 %550
  %v552 = vsel %vm75, %v384, 0.0
  %553 = vadd.xlane.f32.xlu0 %v552
  %v554 = vpop.xlane.xlu0 %553
  %v555 = vsel %vm75, %v385, 0.0
  %556 = vadd.xlane.f32.xlu0 %v555
  %v557 = vpop.xlane.xlu0 %556
  %v558 = vsel %vm75, %v386, 0.0
  %559 = vadd.xlane.f32.xlu0 %v558
  %v560 = vpop.xlane.xlu0 %559
  %v561 = vsel %vm75, %v387, 0.0
  %562 = vadd.xlane.f32.xlu0 %v561
  %v563 = vpop.xlane.xlu0 %562
  %v564 = vsel %vm75, %v388, 0.0
  %565 = vadd.xlane.f32.xlu0 %v564
  %v566 = vpop.xlane.xlu0 %565
  %v567 = vsel %vm75, %v389, 0.0
  %568 = vadd.xlane.f32.xlu0 %v567
  %v569 = vpop.xlane.xlu0 %568
  %v570 = vsel %vm75, %v390, 0.0
  %571 = vadd.xlane.f32.xlu0 %v570
  %v572 = vpop.xlane.xlu0 %571
  %v573 = vsel %vm75, %v391, 0.0
  %574 = vadd.xlane.f32.xlu0 %v573
  %v575 = vpop.xlane.xlu0 %574
  %v576 = vsel %vm75, %v392, 0.0
  %577 = vadd.xlane.f32.xlu0 %v576
  %v578 = vpop.xlane.xlu0 %577
  %v579 = vsel %vm75, %v393, 0.0
  %580 = vadd.xlane.f32.xlu0 %v579
  %v581 = vpop.xlane.xlu0 %580
  %v582 = vsel %vm75, %v394, 0.0
  %583 = vadd.xlane.f32.xlu0 %v582
  %v584 = vpop.xlane.xlu0 %583
  %v585 = vsel %vm75, %v395, 0.0
  %586 = vadd.xlane.f32.xlu0 %v585
  %v587 = vpop.xlane.xlu0 %586
  %v588 = vmul.f32 %v398, 0.020833334
  %v589 = vmul.f32 %v401, 0.020833334
  %v590 = vmul.f32 %v404, 0.020833334
  %v591 = vmul.f32 %v407, 0.020833334
  %v592 = vmul.f32 %v410, 0.020833334
  %v593 = vmul.f32 %v413, 0.020833334
  %v594 = vmul.f32 %v416, 0.020833334
  %v595 = vmul.f32 %v419, 0.020833334
  %v596 = vmul.f32 %v422, 0.020833334
  %v597 = vmul.f32 %v425, 0.020833334
  %v598 = vmul.f32 %v428, 0.020833334
  %v599 = vmul.f32 %v431, 0.020833334
  %v600 = vmul.f32 %v434, 0.020833334
  %v601 = vmul.f32 %v437, 0.020833334
  %v602 = vmul.f32 %v440, 0.020833334
  %v603 = vmul.f32 %v443, 0.020833334
  %v604 = vmul.f32 %v446, 0.020833334
  %v605 = vmul.f32 %v449, 0.020833334
  %v606 = vmul.f32 %v452, 0.020833334
  %v607 = vmul.f32 %v455, 0.020833334
  %v608 = vmul.f32 %v458, 0.020833334
  %v609 = vmul.f32 %v461, 0.020833334
  %v610 = vmul.f32 %v464, 0.020833334
  %v611 = vmul.f32 %v467, 0.020833334
  %v612 = vmul.f32 %v470, 0.020833334
  %v613 = vmul.f32 %v473, 0.020833334
  %v614 = vmul.f32 %v476, 0.020833334
  %v615 = vmul.f32 %v479, 0.020833334
  %v616 = vmul.f32 %v482, 0.020833334
  %v617 = vmul.f32 %v485, 0.020833334
  %v618 = vmul.f32 %v488, 0.020833334
  %v619 = vmul.f32 %v491, 0.020833334
  %v620 = vmul.f32 %v494, 0.020833334
  %v621 = vmul.f32 %v497, 0.020833334
  %v622 = vmul.f32 %v500, 0.020833334
  %v623 = vmul.f32 %v503, 0.020833334
  %v624 = vmul.f32 %v506, 0.020833334
  %v625 = vmul.f32 %v509, 0.020833334
  %v626 = vmul.f32 %v512, 0.020833334
  %v627 = vmul.f32 %v515, 0.020833334
  %v628 = vmul.f32 %v518, 0.020833334
  %v629 = vmul.f32 %v521, 0.020833334
  %v630 = vmul.f32 %v524, 0.020833334
  %v631 = vmul.f32 %v527, 0.020833334
  %v632 = vmul.f32 %v530, 0.020833334
  %v633 = vmul.f32 %v533, 0.020833334
  %v634 = vmul.f32 %v536, 0.020833334
  %v635 = vmul.f32 %v539, 0.020833334
  %v636 = vmul.f32 %v542, 0.020833334
  %v637 = vmul.f32 %v545, 0.020833334
  %v638 = vmul.f32 %v548, 0.020833334
  %v639 = vmul.f32 %v551, 0.020833334
  %v640 = vmul.f32 %v554, 0.020833334
  %v641 = vmul.f32 %v557, 0.020833334
  %v642 = vmul.f32 %v560, 0.020833334
  %v643 = vmul.f32 %v563, 0.020833334
  %v644 = vmul.f32 %v566, 0.020833334
  %v645 = vmul.f32 %v569, 0.020833334
  %v646 = vmul.f32 %v572, 0.020833334
  %v647 = vmul.f32 %v575, 0.020833334
  %v648 = vmul.f32 %v578, 0.020833334
  %v649 = vmul.f32 %v581, 0.020833334
  %v650 = vmul.f32 %v584, 0.020833334
  %v651 = vmul.f32 %v587, 0.020833334
  %v652 = vmul.f32 %v268, %v268
  %v653 = vmul.f32 %v269, %v269
  %v654 = vmul.f32 %v270, %v270
  %v655 = vmul.f32 %v271, %v271
  %v656 = vmul.f32 %v272, %v272
  %v657 = vmul.f32 %v273, %v273
  %v658 = vmul.f32 %v274, %v274
  %v659 = vmul.f32 %v275, %v275
  %v660 = vmul.f32 %v276, %v276
  %v661 = vmul.f32 %v277, %v277
  %v662 = vmul.f32 %v278, %v278
  %v663 = vmul.f32 %v279, %v279
  %v664 = vmul.f32 %v280, %v280
  %v665 = vmul.f32 %v281, %v281
  %v666 = vmul.f32 %v282, %v282
  %v667 = vmul.f32 %v283, %v283
  %v668 = vmul.f32 %v284, %v284
  %v669 = vmul.f32 %v285, %v285
  %v670 = vmul.f32 %v286, %v286
  %v671 = vmul.f32 %v287, %v287
  %v672 = vmul.f32 %v288, %v288
  %v673 = vmul.f32 %v289, %v289
  %v674 = vmul.f32 %v290, %v290
  %v675 = vmul.f32 %v291, %v291
  %v676 = vmul.f32 %v292, %v292
  %v677 = vmul.f32 %v293, %v293
  %v678 = vmul.f32 %v294, %v294
  %v679 = vmul.f32 %v295, %v295
  %v680 = vmul.f32 %v296, %v296
  %v681 = vmul.f32 %v297, %v297
  %v682 = vmul.f32 %v298, %v298
  %v683 = vmul.f32 %v299, %v299
  %v684 = vmul.f32 %v300, %v300
  %v685 = vmul.f32 %v301, %v301
  %v686 = vmul.f32 %v302, %v302
  %v687 = vmul.f32 %v303, %v303
  %v688 = vmul.f32 %v304, %v304
  %v689 = vmul.f32 %v305, %v305
  %v690 = vmul.f32 %v306, %v306
  %v691 = vmul.f32 %v307, %v307
  %v692 = vmul.f32 %v308, %v308
  %v693 = vmul.f32 %v309, %v309
  %v694 = vmul.f32 %v310, %v310
  %v695 = vmul.f32 %v311, %v311
  %v696 = vmul.f32 %v312, %v312
  %v697 = vmul.f32 %v313, %v313
  %v698 = vmul.f32 %v314, %v314
  %v699 = vmul.f32 %v315, %v315
  %v700 = vmul.f32 %v316, %v316
  %v701 = vmul.f32 %v317, %v317
  %v702 = vmul.f32 %v318, %v318
  %v703 = vmul.f32 %v319, %v319
  %v704 = vmul.f32 %v320, %v320
  %v705 = vmul.f32 %v321, %v321
  %v706 = vmul.f32 %v322, %v322
  %v707 = vmul.f32 %v323, %v323
  %v708 = vmul.f32 %v324, %v324
  %v709 = vmul.f32 %v325, %v325
  %v710 = vmul.f32 %v326, %v326
  %v711 = vmul.f32 %v327, %v327
  %v712 = vmul.f32 %v328, %v328
  %v713 = vmul.f32 %v329, %v329
  %v714 = vmul.f32 %v330, %v330
  %v715 = vmul.f32 %v331, %v331
  %v716 = vsub.f32 %v588, %v652
  %v717 = vsub.f32 %v589, %v653
  %v718 = vsub.f32 %v590, %v654
  %v719 = vsub.f32 %v591, %v655
  %v720 = vsub.f32 %v592, %v656
  %v721 = vsub.f32 %v593, %v657
  %v722 = vsub.f32 %v594, %v658
  %v723 = vsub.f32 %v595, %v659
  %v724 = vsub.f32 %v596, %v660
  %v725 = vsub.f32 %v597, %v661
  %v726 = vsub.f32 %v598, %v662
  %v727 = vsub.f32 %v599, %v663
  %v728 = vsub.f32 %v600, %v664
  %v729 = vsub.f32 %v601, %v665
  %v730 = vsub.f32 %v602, %v666
  %v731 = vsub.f32 %v603, %v667
  %v732 = vsub.f32 %v604, %v668
  %v733 = vsub.f32 %v605, %v669
  %v734 = vsub.f32 %v606, %v670
  %v735 = vsub.f32 %v607, %v671
  %v736 = vsub.f32 %v608, %v672
  %v737 = vsub.f32 %v609, %v673
  %v738 = vsub.f32 %v610, %v674
  %v739 = vsub.f32 %v611, %v675
  %v740 = vsub.f32 %v612, %v676
  %v741 = vsub.f32 %v613, %v677
  %v742 = vsub.f32 %v614, %v678
  %v743 = vsub.f32 %v615, %v679
  %v744 = vsub.f32 %v616, %v680
  %v745 = vsub.f32 %v617, %v681
  %v746 = vsub.f32 %v618, %v682
  %v747 = vsub.f32 %v619, %v683
  %v748 = vsub.f32 %v620, %v684
  %v749 = vsub.f32 %v621, %v685
  %v750 = vsub.f32 %v622, %v686
  %v751 = vsub.f32 %v623, %v687
  %v752 = vsub.f32 %v624, %v688
  %v753 = vsub.f32 %v625, %v689
  %v754 = vsub.f32 %v626, %v690
  %v755 = vsub.f32 %v627, %v691
  %v756 = vsub.f32 %v628, %v692
  %v757 = vsub.f32 %v629, %v693
  %v758 = vsub.f32 %v630, %v694
  %v759 = vsub.f32 %v631, %v695
  %v760 = vsub.f32 %v632, %v696
  %v761 = vsub.f32 %v633, %v697
  %v762 = vsub.f32 %v634, %v698
  %v763 = vsub.f32 %v635, %v699
  %v764 = vsub.f32 %v636, %v700
  %v765 = vsub.f32 %v637, %v701
  %v766 = vsub.f32 %v638, %v702
  %v767 = vsub.f32 %v639, %v703
  %v768 = vsub.f32 %v640, %v704
  %v769 = vsub.f32 %v641, %v705
  %v770 = vsub.f32 %v642, %v706
  %v771 = vsub.f32 %v643, %v707
  %v772 = vsub.f32 %v644, %v708
  %v773 = vsub.f32 %v645, %v709
  %v774 = vsub.f32 %v646, %v710
  %v775 = vsub.f32 %v647, %v711
  %v776 = vsub.f32 %v648, %v712
  %v777 = vsub.f32 %v649, %v713
  %v778 = vsub.f32 %v650, %v714
  %v779 = vsub.f32 %v651, %v715
  %v780 = vmax.f32 %v716, 0.0
  %v781 = vmax.f32 %v717, 0.0
  %v782 = vmax.f32 %v718, 0.0
  %v783 = vmax.f32 %v719, 0.0
  %v784 = vmax.f32 %v720, 0.0
  %v785 = vmax.f32 %v721, 0.0
  %v786 = vmax.f32 %v722, 0.0
  %v787 = vmax.f32 %v723, 0.0
  %v788 = vmax.f32 %v724, 0.0
  %v789 = vmax.f32 %v725, 0.0
  %v790 = vmax.f32 %v726, 0.0
  %v791 = vmax.f32 %v727, 0.0
  %v792 = vmax.f32 %v728, 0.0
  %v793 = vmax.f32 %v729, 0.0
  %v794 = vmax.f32 %v730, 0.0
  %v795 = vmax.f32 %v731, 0.0
  %v796 = vmax.f32 %v732, 0.0
  %v797 = vmax.f32 %v733, 0.0
  %v798 = vmax.f32 %v734, 0.0
  %v799 = vmax.f32 %v735, 0.0
  %v800 = vmax.f32 %v736, 0.0
  %v801 = vmax.f32 %v737, 0.0
  %v802 = vmax.f32 %v738, 0.0
  %v803 = vmax.f32 %v739, 0.0
  %v804 = vmax.f32 %v740, 0.0
  %v805 = vmax.f32 %v741, 0.0
  %v806 = vmax.f32 %v742, 0.0
  %v807 = vmax.f32 %v743, 0.0
  %v808 = vmax.f32 %v744, 0.0
  %v809 = vmax.f32 %v745, 0.0
  %v810 = vmax.f32 %v746, 0.0
  %v811 = vmax.f32 %v747, 0.0
  %v812 = vmax.f32 %v748, 0.0
  %v813 = vmax.f32 %v749, 0.0
  %v814 = vmax.f32 %v750, 0.0
  %v815 = vmax.f32 %v751, 0.0
  %v816 = vmax.f32 %v752, 0.0
  %v817 = vmax.f32 %v753, 0.0
  %v818 = vmax.f32 %v754, 0.0
  %v819 = vmax.f32 %v755, 0.0
  %v820 = vmax.f32 %v756, 0.0
  %v821 = vmax.f32 %v757, 0.0
  %v822 = vmax.f32 %v758, 0.0
  %v823 = vmax.f32 %v759, 0.0
  %v824 = vmax.f32 %v760, 0.0
  %v825 = vmax.f32 %v761, 0.0
  %v826 = vmax.f32 %v762, 0.0
  %v827 = vmax.f32 %v763, 0.0
  %v828 = vmax.f32 %v764, 0.0
  %v829 = vmax.f32 %v765, 0.0
  %v830 = vmax.f32 %v766, 0.0
  %v831 = vmax.f32 %v767, 0.0
  %v832 = vmax.f32 %v768, 0.0
  %v833 = vmax.f32 %v769, 0.0
  %v834 = vmax.f32 %v770, 0.0
  %v835 = vmax.f32 %v771, 0.0
  %v836 = vmax.f32 %v772, 0.0
  %v837 = vmax.f32 %v773, 0.0
  %v838 = vmax.f32 %v774, 0.0
  %v839 = vmax.f32 %v775, 0.0
  %v840 = vmax.f32 %v776, 0.0
  %v841 = vmax.f32 %v777, 0.0
  %v842 = vmax.f32 %v778, 0.0
  %v843 = vmax.f32 %v779, 0.0
  %v844 = vadd.f32 %v780, 1e-05
  %v845 = vadd.f32 %v781, 1e-05
  %v846 = vadd.f32 %v782, 1e-05
  %v847 = vadd.f32 %v783, 1e-05
  %v848 = vadd.f32 %v784, 1e-05
  %v849 = vadd.f32 %v785, 1e-05
  %v850 = vadd.f32 %v786, 1e-05
  %v851 = vadd.f32 %v787, 1e-05
  %v852 = vadd.f32 %v788, 1e-05
  %v853 = vadd.f32 %v789, 1e-05
  %v854 = vadd.f32 %v790, 1e-05
  %v855 = vadd.f32 %v791, 1e-05
  %v856 = vadd.f32 %v792, 1e-05
  %v857 = vadd.f32 %v793, 1e-05
  %v858 = vadd.f32 %v794, 1e-05
  %v859 = vadd.f32 %v795, 1e-05
  %v860 = vadd.f32 %v796, 1e-05
  %v861 = vadd.f32 %v797, 1e-05
  %v862 = vadd.f32 %v798, 1e-05
  %v863 = vadd.f32 %v799, 1e-05
  %v864 = vadd.f32 %v800, 1e-05
  %v865 = vadd.f32 %v801, 1e-05
  %v866 = vadd.f32 %v802, 1e-05
  %v867 = vadd.f32 %v803, 1e-05
  %v868 = vadd.f32 %v804, 1e-05
  %v869 = vadd.f32 %v805, 1e-05
  %v870 = vadd.f32 %v806, 1e-05
  %v871 = vadd.f32 %v807, 1e-05
  %v872 = vadd.f32 %v808, 1e-05
  %v873 = vadd.f32 %v809, 1e-05
  %v874 = vadd.f32 %v810, 1e-05
  %v875 = vadd.f32 %v811, 1e-05
  %v876 = vadd.f32 %v812, 1e-05
  %v877 = vadd.f32 %v813, 1e-05
  %v878 = vadd.f32 %v814, 1e-05
  %v879 = vadd.f32 %v815, 1e-05
  %v880 = vadd.f32 %v816, 1e-05
  %v881 = vadd.f32 %v817, 1e-05
  %v882 = vadd.f32 %v818, 1e-05
  %v883 = vadd.f32 %v819, 1e-05
  %v884 = vadd.f32 %v820, 1e-05
  %v885 = vadd.f32 %v821, 1e-05
  %v886 = vadd.f32 %v822, 1e-05
  %v887 = vadd.f32 %v823, 1e-05
  %v888 = vadd.f32 %v824, 1e-05
  %v889 = vadd.f32 %v825, 1e-05
  %v890 = vadd.f32 %v826, 1e-05
  %v891 = vadd.f32 %v827, 1e-05
  %v892 = vadd.f32 %v828, 1e-05
  %v893 = vadd.f32 %v829, 1e-05
  %v894 = vadd.f32 %v830, 1e-05
  %v895 = vadd.f32 %v831, 1e-05
  %v896 = vadd.f32 %v832, 1e-05
  %v897 = vadd.f32 %v833, 1e-05
  %v898 = vadd.f32 %v834, 1e-05
  %v899 = vadd.f32 %v835, 1e-05
  %v900 = vadd.f32 %v836, 1e-05
  %v901 = vadd.f32 %v837, 1e-05
  %v902 = vadd.f32 %v838, 1e-05
  %v903 = vadd.f32 %v839, 1e-05
  %v904 = vadd.f32 %v840, 1e-05
  %v905 = vadd.f32 %v841, 1e-05
  %v906 = vadd.f32 %v842, 1e-05
  %v907 = vadd.f32 %v843, 1e-05
  %v908 = vrsqrt.pop %v844
  %v909 = vrsqrt.pop %v845
  %v910 = vrsqrt.pop %v846
  %v911 = vrsqrt.pop %v847
  %v912 = vrsqrt.pop %v848
  %v913 = vrsqrt.pop %v849
  %v914 = vrsqrt.pop %v850
  %v915 = vrsqrt.pop %v851
  %v916 = vrsqrt.pop %v852
  %v917 = vrsqrt.pop %v853
  %v918 = vrsqrt.pop %v854
  %v919 = vrsqrt.pop %v855
  %v920 = vrsqrt.pop %v856
  %v921 = vrsqrt.pop %v857
  %v922 = vrsqrt.pop %v858
  %v923 = vrsqrt.pop %v859
  %v924 = vrsqrt.pop %v860
  %v925 = vrsqrt.pop %v861
  %v926 = vrsqrt.pop %v862
  %v927 = vrsqrt.pop %v863
  %v928 = vrsqrt.pop %v864
  %v929 = vrsqrt.pop %v865
  %v930 = vrsqrt.pop %v866
  %v931 = vrsqrt.pop %v867
  %v932 = vrsqrt.pop %v868
  %v933 = vrsqrt.pop %v869
  %v934 = vrsqrt.pop %v870
  %v935 = vrsqrt.pop %v871
  %v936 = vrsqrt.pop %v872
  %v937 = vrsqrt.pop %v873
  %v938 = vrsqrt.pop %v874
  %v939 = vrsqrt.pop %v875
  %v940 = vrsqrt.pop %v876
  %v941 = vrsqrt.pop %v877
  %v942 = vrsqrt.pop %v878
  %v943 = vrsqrt.pop %v879
  %v944 = vrsqrt.pop %v880
  %v945 = vrsqrt.pop %v881
  %v946 = vrsqrt.pop %v882
  %v947 = vrsqrt.pop %v883
  %v948 = vrsqrt.pop %v884
  %v949 = vrsqrt.pop %v885
  %v950 = vrsqrt.pop %v886
  %v951 = vrsqrt.pop %v887
  %v952 = vrsqrt.pop %v888
  %v953 = vrsqrt.pop %v889
  %v954 = vrsqrt.pop %v890
  %v955 = vrsqrt.pop %v891
  %v956 = vrsqrt.pop %v892
  %v957 = vrsqrt.pop %v893
  %v958 = vrsqrt.pop %v894
  %v959 = vrsqrt.pop %v895
  %v960 = vrsqrt.pop %v896
  %v961 = vrsqrt.pop %v897
  %v962 = vrsqrt.pop %v898
  %v963 = vrsqrt.pop %v899
  %v964 = vrsqrt.pop %v900
  %v965 = vrsqrt.pop %v901
  %v966 = vrsqrt.pop %v902
  %v967 = vrsqrt.pop %v903
  %v968 = vrsqrt.pop %v904
  %v969 = vrsqrt.pop %v905
  %v970 = vrsqrt.pop %v906
  %v971 = vrsqrt.pop %v907
  %v972 = vld [vmem:[%s1] sm:$0x1]
  %v973 = vmul.f32 %v11, %v908
  %v974 = vmul.f32 %v12, %v909
  %v975 = vmul.f32 %v13, %v910
  %v976 = vmul.f32 %v14, %v911
  %v977 = vmul.f32 %v15, %v912
  %v978 = vmul.f32 %v16, %v913
  %v979 = vmul.f32 %v17, %v914
  %v980 = vmul.f32 %v18, %v915
  %v981 = vmul.f32 %v19, %v916
  %v982 = vmul.f32 %v20, %v917
  %v983 = vmul.f32 %v21, %v918
  %v984 = vmul.f32 %v22, %v919
  %v985 = vmul.f32 %v23, %v920
  %v986 = vmul.f32 %v24, %v921
  %v987 = vmul.f32 %v25, %v922
  %v988 = vmul.f32 %v26, %v923
  %v989 = vmul.f32 %v27, %v924
  %v990 = vmul.f32 %v28, %v925
  %v991 = vmul.f32 %v29, %v926
  %v992 = vmul.f32 %v30, %v927
  %v993 = vmul.f32 %v31, %v928
  %v994 = vmul.f32 %v32, %v929
  %v995 = vmul.f32 %v33, %v930
  %v996 = vmul.f32 %v34, %v931
  %v997 = vmul.f32 %v35, %v932
  %v998 = vmul.f32 %v36, %v933
  %v999 = vmul.f32 %v37, %v934
  %v1000 = vmul.f32 %v38, %v935
  %v1001 = vmul.f32 %v39, %v936
  %v1002 = vmul.f32 %v40, %v937
  %v1003 = vmul.f32 %v41, %v938
  %v1004 = vmul.f32 %v42, %v939
  %v1005 = vmul.f32 %v43, %v940
  %v1006 = vmul.f32 %v44, %v941
  %v1007 = vmul.f32 %v45, %v942
  %v1008 = vmul.f32 %v46, %v943
  %v1009 = vmul.f32 %v47, %v944
  %v1010 = vmul.f32 %v48, %v945
  %v1011 = vmul.f32 %v49, %v946
  %v1012 = vmul.f32 %v50, %v947
  %v1013 = vmul.f32 %v51, %v948
  %v1014 = vmul.f32 %v52, %v949
  %v1015 = vmul.f32 %v53, %v950
  %v1016 = vmul.f32 %v54, %v951
  %v1017 = vmul.f32 %v55, %v952
  %v1018 = vmul.f32 %v56, %v953
  %v1019 = vmul.f32 %v57, %v954
  %v1020 = vmul.f32 %v58, %v955
  %v1021 = vmul.f32 %v59, %v956
  %v1022 = vmul.f32 %v60, %v957
  %v1023 = vmul.f32 %v61, %v958
  %v1024 = vmul.f32 %v62, %v959
  %v1025 = vmul.f32 %v63, %v960
  %v1026 = vmul.f32 %v64, %v961
  %v1027 = vmul.f32 %v65, %v962
  %v1028 = vmul.f32 %v66, %v963
  %v1029 = vmul.f32 %v67, %v964
  %v1030 = vmul.f32 %v68, %v965
  %v1031 = vmul.f32 %v69, %v966
  %v1032 = vmul.f32 %v70, %v967
  %v1033 = vmul.f32 %v71, %v968
  %v1034 = vmul.f32 %v72, %v969
  %v1035 = vmul.f32 %v73, %v970
  %v1036 = vmul.f32 %v74, %v971
  %v1038 = vlaneseq
  %v1039 = vshrl.u32 %v1038, 7
  %v1040 = vsub.s32 0, %v1039
  %v1041 = vrot.slane %v972, %v1040
  %v1043 = vmul.f32 %v973, %v1041
  %v1044 = vmul.f32 %v974, %v1041
  %v1045 = vmul.f32 %v975, %v1041
  %v1046 = vmul.f32 %v976, %v1041
  %v1047 = vmul.f32 %v977, %v1041
  %v1048 = vmul.f32 %v978, %v1041
  %v1049 = vmul.f32 %v979, %v1041
  %v1050 = vmul.f32 %v980, %v1041
  %v1051 = vmul.f32 %v981, %v1041
  %v1052 = vmul.f32 %v982, %v1041
  %v1053 = vmul.f32 %v983, %v1041
  %v1054 = vmul.f32 %v984, %v1041
  %v1055 = vmul.f32 %v985, %v1041
  %v1056 = vmul.f32 %v986, %v1041
  %v1057 = vmul.f32 %v987, %v1041
  %v1058 = vmul.f32 %v988, %v1041
  %v1059 = vmul.f32 %v989, %v1041
  %v1060 = vmul.f32 %v990, %v1041
  %v1061 = vmul.f32 %v991, %v1041
  %v1062 = vmul.f32 %v992, %v1041
  %v1063 = vmul.f32 %v993, %v1041
  %v1064 = vmul.f32 %v994, %v1041
  %v1065 = vmul.f32 %v995, %v1041
  %v1066 = vmul.f32 %v996, %v1041
  %v1067 = vmul.f32 %v997, %v1041
  %v1068 = vmul.f32 %v998, %v1041
  %v1069 = vmul.f32 %v999, %v1041
  %v1070 = vmul.f32 %v1000, %v1041
  %v1071 = vmul.f32 %v1001, %v1041
  %v1072 = vmul.f32 %v1002, %v1041
  %v1073 = vmul.f32 %v1003, %v1041
  %v1074 = vmul.f32 %v1004, %v1041
  %v1075 = vmul.f32 %v1005, %v1041
  %v1076 = vmul.f32 %v1006, %v1041
  %v1077 = vmul.f32 %v1007, %v1041
  %v1078 = vmul.f32 %v1008, %v1041
  %v1079 = vmul.f32 %v1009, %v1041
  %v1080 = vmul.f32 %v1010, %v1041
  %v1081 = vmul.f32 %v1011, %v1041
  %v1082 = vmul.f32 %v1012, %v1041
  %v1083 = vmul.f32 %v1013, %v1041
  %v1084 = vmul.f32 %v1014, %v1041
  %v1085 = vmul.f32 %v1015, %v1041
  %v1086 = vmul.f32 %v1016, %v1041
  %v1087 = vmul.f32 %v1017, %v1041
  %v1088 = vmul.f32 %v1018, %v1041
  %v1089 = vmul.f32 %v1019, %v1041
  %v1090 = vmul.f32 %v1020, %v1041
  %v1091 = vmul.f32 %v1021, %v1041
  %v1092 = vmul.f32 %v1022, %v1041
  %v1093 = vmul.f32 %v1023, %v1041
  %v1094 = vmul.f32 %v1024, %v1041
  %v1095 = vmul.f32 %v1025, %v1041
  %v1096 = vmul.f32 %v1026, %v1041
  %v1097 = vmul.f32 %v1027, %v1041
  %v1098 = vmul.f32 %v1028, %v1041
  %v1099 = vmul.f32 %v1029, %v1041
  %v1100 = vmul.f32 %v1030, %v1041
  %v1101 = vmul.f32 %v1031, %v1041
  %v1102 = vmul.f32 %v1032, %v1041
  %v1103 = vmul.f32 %v1033, %v1041
  %v1104 = vmul.f32 %v1034, %v1041
  %v1105 = vmul.f32 %v1035, %v1041
  %v1106 = vmul.f32 %v1036, %v1041
  %1107 = vst.msk [vmem:[%s2] sm:$0xff] %vm75, %v1043
  %1108 = vst.msk [vmem:[%s2 + $0x8] sm:$0xff] %vm75, %v1044
  %1109 = vst.msk [vmem:[%s2 + $0x10] sm:$0xff] %vm75, %v1045
  %1110 = vst.msk [vmem:[%s2 + $0x18] sm:$0xff] %vm75, %v1046
  %1111 = vst.msk [vmem:[%s2 + $0x20] sm:$0xff] %vm75, %v1047
  %1112 = vst.msk [vmem:[%s2 + $0x28] sm:$0xff] %vm75, %v1048
  %1113 = vst.msk [vmem:[%s2 + $0x30] sm:$0xff] %vm75, %v1049
  %1114 = vst.msk [vmem:[%s2 + $0x38] sm:$0xff] %vm75, %v1050
  %1115 = vst.msk [vmem:[%s2 + $0x40] sm:$0xff] %vm75, %v1051
  %1116 = vst.msk [vmem:[%s2 + $0x48] sm:$0xff] %vm75, %v1052
  %1117 = vst.msk [vmem:[%s2 + $0x50] sm:$0xff] %vm75, %v1053
  %1118 = vst.msk [vmem:[%s2 + $0x58] sm:$0xff] %vm75, %v1054
  %1119 = vst.msk [vmem:[%s2 + $0x60] sm:$0xff] %vm75, %v1055
  %1120 = vst.msk [vmem:[%s2 + $0x68] sm:$0xff] %vm75, %v1056
  %1121 = vst.msk [vmem:[%s2 + $0x70] sm:$0xff] %vm75, %v1057
  %1122 = vst.msk [vmem:[%s2 + $0x78] sm:$0xff] %vm75, %v1058
  %1123 = vst.msk [vmem:[%s2 + $0x80] sm:$0xff] %vm75, %v1059
  %1124 = vst.msk [vmem:[%s2 + $0x88] sm:$0xff] %vm75, %v1060
  %1125 = vst.msk [vmem:[%s2 + $0x90] sm:$0xff] %vm75, %v1061
  %1126 = vst.msk [vmem:[%s2 + $0x98] sm:$0xff] %vm75, %v1062
  %1127 = vst.msk [vmem:[%s2 + $0xa0] sm:$0xff] %vm75, %v1063
  %1128 = vst.msk [vmem:[%s2 + $0xa8] sm:$0xff] %vm75, %v1064
  %1129 = vst.msk [vmem:[%s2 + $0xb0] sm:$0xff] %vm75, %v1065
  %1130 = vst.msk [vmem:[%s2 + $0xb8] sm:$0xff] %vm75, %v1066
  %1131 = vst.msk [vmem:[%s2 + $0xc0] sm:$0xff] %vm75, %v1067
  %1132 = vst.msk [vmem:[%s2 + $0xc8] sm:$0xff] %vm75, %v1068
  %1133 = vst.msk [vmem:[%s2 + $0xd0] sm:$0xff] %vm75, %v1069
  %1134 = vst.msk [vmem:[%s2 + $0xd8] sm:$0xff] %vm75, %v1070
  %1135 = vst.msk [vmem:[%s2 + $0xe0] sm:$0xff] %vm75, %v1071
  %1136 = vst.msk [vmem:[%s2 + $0xe8] sm:$0xff] %vm75, %v1072
  %1137 = vst.msk [vmem:[%s2 + $0xf0] sm:$0xff] %vm75, %v1073
  %1138 = vst.msk [vmem:[%s2 + $0xf8] sm:$0xff] %vm75, %v1074
  %1139 = vst.msk [vmem:[%s2 + $0x100] sm:$0xff] %vm75, %v1075
  %1140 = vst.msk [vmem:[%s2 + $0x108] sm:$0xff] %vm75, %v1076
  %1141 = vst.msk [vmem:[%s2 + $0x110] sm:$0xff] %vm75, %v1077
  %1142 = vst.msk [vmem:[%s2 + $0x118] sm:$0xff] %vm75, %v1078
  %1143 = vst.msk [vmem:[%s2 + $0x120] sm:$0xff] %vm75, %v1079
  %1144 = vst.msk [vmem:[%s2 + $0x128] sm:$0xff] %vm75, %v1080
  %1145 = vst.msk [vmem:[%s2 + $0x130] sm:$0xff] %vm75, %v1081
  %1146 = vst.msk [vmem:[%s2 + $0x138] sm:$0xff] %vm75, %v1082
  %1147 = vst.msk [vmem:[%s2 + $0x140] sm:$0xff] %vm75, %v1083
  %1148 = vst.msk [vmem:[%s2 + $0x148] sm:$0xff] %vm75, %v1084
  %1149 = vst.msk [vmem:[%s2 + $0x150] sm:$0xff] %vm75, %v1085
  %1150 = vst.msk [vmem:[%s2 + $0x158] sm:$0xff] %vm75, %v1086
  %1151 = vst.msk [vmem:[%s2 + $0x160] sm:$0xff] %vm75, %v1087
  %1152 = vst.msk [vmem:[%s2 + $0x168] sm:$0xff] %vm75, %v1088
  %1153 = vst.msk [vmem:[%s2 + $0x170] sm:$0xff] %vm75, %v1089
  %1154 = vst.msk [vmem:[%s2 + $0x178] sm:$0xff] %vm75, %v1090
  %1155 = vst.msk [vmem:[%s2 + $0x180] sm:$0xff] %vm75, %v1091
  %1156 = vst.msk [vmem:[%s2 + $0x188] sm:$0xff] %vm75, %v1092
  %1157 = vst.msk [vmem:[%s2 + $0x190] sm:$0xff] %vm75, %v1093
  %1158 = vst.msk [vmem:[%s2 + $0x198] sm:$0xff] %vm75, %v1094
  %1159 = vst.msk [vmem:[%s2 + $0x1a0] sm:$0xff] %vm75, %v1095
  %1160 = vst.msk [vmem:[%s2 + $0x1a8] sm:$0xff] %vm75, %v1096
  %1161 = vst.msk [vmem:[%s2 + $0x1b0] sm:$0xff] %vm75, %v1097
  %1162 = vst.msk [vmem:[%s2 + $0x1b8] sm:$0xff] %vm75, %v1098
  %1163 = vst.msk [vmem:[%s2 + $0x1c0] sm:$0xff] %vm75, %v1099
  %1164 = vst.msk [vmem:[%s2 + $0x1c8] sm:$0xff] %vm75, %v1100
  %1165 = vst.msk [vmem:[%s2 + $0x1d0] sm:$0xff] %vm75, %v1101
  %1166 = vst.msk [vmem:[%s2 + $0x1d8] sm:$0xff] %vm75, %v1102
  %1167 = vst.msk [vmem:[%s2 + $0x1e0] sm:$0xff] %vm75, %v1103
  %1168 = vst.msk [vmem:[%s2 + $0x1e8] sm:$0xff] %vm75, %v1104
  %1169 = vst.msk [vmem:[%s2 + $0x1f0] sm:$0xff] %vm75, %v1105
  %1170 = vst.msk [vmem:[%s2 + $0x1f8] sm:$0xff] %vm75, %v1106
  // Predicated region
  $region10: #{tpu_custom_call.1} parent=0 // pred_check
    _
  $region11: #{tpu_custom_call.1} parent=0 // pred_check_branch
    %1172 = sbr.rel (0) target = $region13
  $region12: #{tpu_custom_call.1} parent=0 // pred_region
    _
  $region13: #{tpu_custom_call.1} parent=0 // pred_fallthru
    _
  // Predicated region
  $region14: #{tpu_custom_call.1} parent=0 // pred_check
    _
  $region15: #{tpu_custom_call.1} parent=0 // pred_check_branch
    %1174 = sbr.rel (0) target = $region17
  $region16: #{tpu_custom_call.1} parent=0 // pred_region
    _
  $region17: #{tpu_custom_call.1} parent=0 // pred_fallthru
    _

</llo_original>
